<compile_context>
chip_gen: v7x
topology: tpu7x:2x2x1
jax: 0.10.0
libtpu: 0.0.40
codegen_flags: <defaults>
</compile_context>

<pallas_src>
import numpy as np
import jax
import jax.numpy as jnp
from jax.experimental import pallas as pl
from jax.experimental.pallas import tpu as pltpu


_NEG_FILL = np.float32(-1e30)                    # "minus infinity" that stays NaN-free
_F32_TINY = np.float32(np.finfo(np.float32).tiny)


def _round_up(x, m):
    return (x + m - 1) // m * m


def _pick_col_tile(n_cols, tn_max):
    """128-aligned column tile. Prefers >= 2 grid steps (v7x has 2 TensorCores; a
    1-step 'parallel' grid leaves one idle) and splits the padded column count as
    evenly as possible so the last tile is not mostly padding."""
    tn_max = max(128, _round_up(tn_max, 128))
    ncp = _round_up(n_cols, 128)
    steps = max(2, -(-ncp // tn_max))
    return min(_round_up(-(-ncp // steps), 128), tn_max)


def _vmem_limit(streamed_tile_bytes, resident_bytes=0):
    """Scoped-VMEM limit from the actual double-buffered tile sizes (+ headroom),
    kept well under v7x's 64 MiB physical VMEM."""
    need = 2 * streamed_tile_bytes + resident_bytes + (4 << 20)
    return int(min(max(need, 16 << 20), 40 << 20))


# ----------------------------------------------------------------------------
# Transfer-matrix construction (faithful port of Profile._make_transfer).
# Host-side setup glue, not part of the hot path.
# ----------------------------------------------------------------------------
def mg2k(m, g, M):
    """Convert from (m, g) indexing to k indexing."""
    return m + M * g


def make_transfer(M):
    K = 2 * M + 1
    r0 = np.zeros((M, 3, 2, K), np.float32)
    u0 = np.zeros((M, 3, 2, K), np.float32)
    n0 = np.zeros((K,), np.float32)
    m, g = -1, 0
    for gp in range(2):
        for mp in range(M + gp):
            kp = mg2k(mp, gp, M)
            if m + 1 - g == mp and gp == 0:
                r0[m + 1 - g, g, 0, kp] = 1
                u0[m + 1 - g, g, 0, kp] = 1
            elif m + 1 - g < mp and gp == 0:
                r0[m + 1 - g, g, 0, kp] = 1
                u0[m + 1 - g, g, 1, kp] = 1
                for mpp in range(m + 2 - g, mp):
                    r0[mpp, 2, 0, kp] = 1
                    u0[mpp, 2, 1, kp] = 1
                r0[mp, 2, 0, kp] = 1
                u0[mp, 2, 0, kp] = 1
            elif m + 1 - g == mp and gp == 1:
                if mp < M:
                    r0[m + 1 - g, g, 1, kp] = 1
            elif m + 1 - g < mp and gp == 1:
                r0[m + 1 - g, g, 0, kp] = 1
                u0[m + 1 - g, g, 1, kp] = 1
                for mpp in range(m + 2 - g, mp):
                    r0[mpp, 2, 0, kp] = 1
                    u0[mpp, 2, 1, kp] = 1
                if mp < M:
                    r0[mp, 2, 1, kp] = 1
            else:
                n0[kp] = 1

    rT = np.zeros((M, 3, 2, K, K), np.float32)
    uT = np.zeros((M, 3, 2, K, K), np.float32)
    nT = np.zeros((K, K), np.float32)
    for g in range(2):
        for m in range(M + g):
            for gp in range(2):
                for mp in range(M + gp):
                    k, kp = mg2k(m, g, M), mg2k(mp, gp, M)
                    if m + 1 - g == mp and gp == 0:
                        rT[m + 1 - g, g, 0, k, kp] = 1
                        uT[m + 1 - g, g, 0, k, kp] = 1
                    elif m + 1 - g < mp and gp == 0:
                        rT[m + 1 - g, g, 0, k, kp] = 1
                        uT[m + 1 - g, g, 1, k, kp] = 1
                        rT[m + 2 - g:mp, 2, 0, k, kp] = 1
                        uT[m + 2 - g:mp, 2, 1, k, kp] = 1
                        rT[mp, 2, 0, k, kp] = 1
                        uT[mp, 2, 0, k, kp] = 1
                    elif m + 1 - g == mp and gp == 1:
                        if mp < M:
                            rT[m + 1 - g, g, 1, k, kp] = 1
                    elif m + 1 - g < mp and gp == 1:
                        rT[m + 1 - g, g, 0, k, kp] = 1
                        uT[m + 1 - g, g, 1, k, kp] = 1
                        rT[m + 2 - g:mp, 2, 0, k, kp] = 1
                        uT[m + 2 - g:mp, 2, 1, k, kp] = 1
                        if mp < M:
                            rT[mp, 2, 1, k, kp] = 1
                    else:
                        nT[k, kp] = 1
    # vx_transf / vc_transf (and the debug prints) are built in __init__ but unused
    # in forward -> skipped.
    return r0, u0, n0, rT, uT, nT


# ----------------------------------------------------------------------------
# Kernel 1: fused masked matmul for initial + transition logits.
#   hi, lo : (Bp, Cp)  bf16   (hi + lo == f32 lhs; two passes recover ~f32 accuracy)
#   w      : (Cp, TN)  int8   0/1 transfer-matrix tile, converted to bf16 in-kernel
#   null   : (1,  TN)  f32    0 or exactly -1/epsilon, exact rank-1 add
#   out    : (Bp, TN)  f32
# ----------------------------------------------------------------------------
def _fused_logits_kernel(hi_ref, lo_ref, w_ref, null_ref, o_ref):
    w = w_ref[...].astype(jnp.bfloat16)                      # int8 {0,1} -> bf16 (exact)
    acc = jnp.dot(hi_ref[...], w, preferred_element_type=jnp.float32)
    acc = acc + jnp.dot(lo_ref[...], w, preferred_element_type=jnp.float32)
    o_ref[...] = acc + null_ref[...]                         # exact f32 -1/eps term


def _fused_masked_matmul(lhs_hi, lhs_lo, w_i8, null_row, tn):
    bp, cp = lhs_hi.shape
    n = w_i8.shape[1]
    assert n % tn == 0
    vmem = _vmem_limit(cp * tn * 1 + tn * 4 + bp * tn * 4,       # streamed per-step tiles
                       resident_bytes=2 * bp * cp * 2 + cp * tn * 2)  # lhs + bf16 temp
    return pl.pallas_call(
        _fused_logits_kernel,
        out_shape=jax.ShapeDtypeStruct((bp, n), jnp.float32),
        grid=(n // tn,),
        in_specs=[pl.BlockSpec((bp, cp), lambda j: (0, 0)),      # lhs hi (resident)
                  pl.BlockSpec((bp, cp), lambda j: (0, 0)),      # lhs lo (resident)
                  pl.BlockSpec((cp, tn), lambda j: (0, j)),      # int8 weight tile (stream)
                  pl.BlockSpec((1, tn), lambda j: (0, j))],      # f32 null row (stream)
        out_specs=pl.BlockSpec((bp, tn), lambda j: (0, j)),
        compiler_params=pltpu.CompilerParams(
            dimension_semantics=("parallel",),
            vmem_limit_bytes=vmem),
    )(lhs_hi, lhs_lo, w_i8, null_row)


# ----------------------------------------------------------------------------
# Kernel 2: observation_logits = logsumexp_d(seq[...,k,d] + sub[...,d,a]),
# computed transposed so the only large axis sits on lanes.
# ----------------------------------------------------------------------------
def _obs_folded_kernel(sub_ref, seq_ref, out_ref):
    # sub: (Ap, Dp) shared across the whole grid; seq: (Dp, TK) with batch*K folded
    # onto lanes; out: (Ap, TK).
    sub = sub_ref[...]
    seq = seq_ref[...]
    m2 = jnp.max(sub, axis=1, keepdims=True)                 # (Ap, 1)
    m1 = jnp.max(seq, axis=0, keepdims=True)                 # (1, TK)
    p = jnp.dot(jnp.exp(sub - m2), jnp.exp(seq - m1),
                preferred_element_type=jnp.float32)
    out_ref[...] = jnp.log(jnp.maximum(p, _F32_TINY)) + m1 + m2


def _obs_batched_kernel(sub_ref, seq_ref, out_ref):
    # sub: (TB, Ap, Dp), seq: (TB, Dp, TK), out: (TB, Ap, TK).
    sub = sub_ref[...]
    seq = seq_ref[...]
    m2 = jnp.max(sub, axis=2, keepdims=True)                 # (TB, Ap, 1)
    m1 = jnp.max(seq, axis=1, keepdims=True)                 # (TB, 1, TK)
    p = jnp.einsum('bad,bdk->bak', jnp.exp(sub - m2), jnp.exp(seq - m1),
                   preferred_element_type=jnp.float32)
    out_ref[...] = jnp.log(jnp.maximum(p, _F32_TINY)) + m1 + m2


def _pad_neg(x, target_shape):
    pads = [(0, t - s) for s, t in zip(x.shape, target_shape)]
    return jnp.pad(x, pads, constant_values=_NEG_FILL)


def _obs_logits_shared_sub(seq3, sub2, tk_obs):
    """seq3: (Bs, K, D) f32, sub2: (D, A) f32 (shared) -> (Bs, K, A).
    Batch is folded onto the lane axis: one (Ap, Dp) x (Dp, Bs*K) tiled matmul."""
    Bs, K, D = seq3.shape
    A = sub2.shape[-1]
    Ap, Dp = _round_up(A, 8), _round_up(D, 8)
    Nc = Bs * K
    tk = _pick_col_tile(Nc, tk_obs)
    Ncp = _round_up(Nc, tk)

    seqF = jnp.transpose(seq3, (2, 0, 1)).reshape(D, Nc)       # wrapper-side layout glue
    seqF = _pad_neg(seqF, (Dp, Ncp))
    subT = _pad_neg(jnp.transpose(sub2, (1, 0)), (Ap, Dp))

    vmem = _vmem_limit(Dp * tk * 4 + Ap * tk * 4, resident_bytes=Ap * Dp * 4)
    outT = pl.pallas_call(
        _obs_folded_kernel,
        out_shape=jax.ShapeDtypeStruct((Ap, Ncp), jnp.float32),
        grid=(Ncp // tk,),
        in_specs=[pl.BlockSpec((Ap, Dp), lambda j: (0, 0)),
                  pl.BlockSpec((Dp, tk), lambda j: (0, j))],
        out_specs=pl.BlockSpec((Ap, tk), lambda j: (0, j)),
        compiler_params=pltpu.CompilerParams(
            dimension_semantics=("parallel",),
            vmem_limit_bytes=vmem),
    )(subT, seqF)
    # NOTE: padded output columns are garbage (m1 over -1e30 padding) -> slice first.
    return jnp.transpose(outT[:A, :Nc].reshape(A, Bs, K), (1, 2, 0))


def _obs_logits_batched_sub(seq3, sub3, tk_obs):
    """seq3: (Bs, K, D), sub3: (Bs, D, A) -> (Bs, K, A).  Blocks TB batch elements per
    grid step so the per-step work amortises the fixed pipeline overhead."""
    Bs, K, D = seq3.shape
    A = sub3.shape[-1]
    Ap, Dp = _round_up(A, 8), _round_up(D, 8)
    tk = _pick_col_tile(K, tk_obs)
    Kp = _round_up(K, tk)
    TB = max(8, min(32, (65536 // tk) // 8 * 8))               # keep TB*tk blocks small
    TB = min(TB, _round_up(Bs, 8))
    Bsp = _round_up(Bs, TB)

    subT = _pad_neg(jnp.transpose(sub3, (0, 2, 1)), (Bsp, Ap, Dp))   # (Bsp, Ap, Dp)
    seqT = _pad_neg(jnp.transpose(seq3, (0, 2, 1)), (Bsp, Dp, Kp))   # (Bsp, Dp, Kp)

    vmem = _vmem_limit(TB * (Ap * Dp + Dp * tk + Ap * tk) * 4)
    outT = pl.pallas_call(
        _obs_batched_kernel,
        out_shape=jax.ShapeDtypeStruct((Bsp, Ap, Kp), jnp.float32),
        grid=(Bsp // TB, Kp // tk),
        in_specs=[pl.BlockSpec((TB, Ap, Dp), lambda b, j: (b, 0, 0)),
                  pl.BlockSpec((TB, Dp, tk), lambda b, j: (b, 0, j))],
        out_specs=pl.BlockSpec((TB, Ap, tk), lambda b, j: (b, 0, j)),
        compiler_params=pltpu.CompilerParams(
            dimension_semantics=("parallel", "parallel"),
            vmem_limit_bytes=vmem),
    )(subT, seqT)
    return jnp.transpose(outT[:Bs, :A, :K], (0, 2, 1))


# ----------------------------------------------------------------------------
# Forward pass wrapper (mirrors Profile.forward).
# ----------------------------------------------------------------------------
def profile_forward(precursor_seq_logits, insert_seq_logits,
                    insert_logits, delete_logits, substitute_logits=None,
                    *, transfer, epsilon=1e-32, tn_trans=8192, tk_obs=8192):
    r0, u0, n0, rT, uT, nT = transfer
    M = r0.shape[0]
    K = r0.shape[-1]
    KK = K * K

    # -1/eps must stay finite in f32 (eps > ~3e-39); safe for the default 1e-32.
    assert epsilon > 3e-39, "epsilon too small: -1/epsilon overflows float32"
    neg_inv_eps = np.float32(-1.0 / epsilon)

    batched = delete_logits.ndim == 4
    if not batched:
        delete_logits = delete_logits[None]
        insert_logits = insert_logits[None]
    B = delete_logits.shape[0]

    # --- init + transition logits: ONE fused masked matmul --------------------
    C = 12 * M                                   # [delete(6M) | insert(6M)]
    Cp = _round_up(C, 128)                       # lane-dense, 128-deep MXU contraction
    Bp = _round_up(B, 8)

    lhs = jnp.concatenate(
        [delete_logits.reshape(B, 6 * M), insert_logits.reshape(B, 6 * M)],
        axis=-1).astype(jnp.float32)
    lhs = jnp.pad(lhs, ((0, Bp - B), (0, Cp - C)))
    lhs_hi = lhs.astype(jnp.bfloat16)                               # f32 = hi + lo
    lhs_lo = (lhs - lhs_hi.astype(jnp.float32)).astype(jnp.bfloat16)

    # 0/1 transfer matrices stored as int8 (exact) -> 4x less HBM traffic than f32.
    w_all = jnp.concatenate(
        [jnp.concatenate([u0.reshape(6 * M, K), r0.reshape(6 * M, K)], axis=0),
         jnp.concatenate([uT.reshape(6 * M, KK), rT.reshape(6 * M, KK)], axis=0)],
        axis=1).astype(jnp.int8)                                     # (12M, K + KK)
    null_all = (jnp.concatenate([n0.reshape(K), nT.reshape(KK)])
                * neg_inv_eps).reshape(1, K + KK).astype(jnp.float32)

    N = K + KK
    # cap the column tile so the (Cp, tn) int8 tile + its transient bf16 copy stay small
    tn_cap = max(128, ((4 << 20) // max(Cp, 1)) // 128 * 128)
    tn = _pick_col_tile(N, min(tn_trans, tn_cap))
    Np = _round_up(N, tn)
    w_all = jnp.pad(w_all, ((0, Cp - C), (0, Np - N)))
    null_all = jnp.pad(null_all, ((0, 0), (0, Np - N)))

    out = _fused_masked_matmul(lhs_hi, lhs_lo, w_all, null_all, tn)
    initial_logits = out[:B, :K]
    transition_logits = out[:B, K:K + KK].reshape(B, K, K)
    if not batched:
        initial_logits = initial_logits[0]
        transition_logits = transition_logits[0]

    # --- broadcast handling for the sequence logits (glue) --------------------
    if precursor_seq_logits.ndim > insert_seq_logits.ndim:
        insert_seq_logits = jnp.broadcast_to(
            insert_seq_logits[None],
            (precursor_seq_logits.shape[0],) + insert_seq_logits.shape)
    elif insert_seq_logits.ndim > precursor_seq_logits.ndim:
        precursor_seq_logits = jnp.broadcast_to(
            precursor_seq_logits[None],
            (insert_seq_logits.shape[0],) + precursor_seq_logits.shape)
    seq_logits = jnp.concatenate(
        [precursor_seq_logits, insert_seq_logits], axis=-2).astype(jnp.float32)

    if substitute_logits is None:
        return initial_logits, transition_logits, seq_logits

    sub = substitute_logits.astype(jnp.float32)
    seq_batched = seq_logits.ndim == 3

    if sub.ndim == 2:
        # shared substitution matrix -> fold batch onto the lane axis
        seq3 = seq_logits if seq_batched else seq_logits[None]
        obs = _obs_logits_shared_sub(seq3, sub, tk_obs)
        if not seq_batched:
            obs = obs[0]
        return initial_logits, transition_logits, obs

    # batched substitution matrix
    Bq = seq_logits.shape[0] if seq_batched else 1
    Bs = max(sub.shape[0], Bq)
    seq3 = seq_logits if seq_batched else seq_logits[None]
    if seq3.shape[0] != Bs:
        seq3 = jnp.broadcast_to(seq3, (Bs,) + seq3.shape[1:])
    if sub.shape[0] != Bs:
        sub = jnp.broadcast_to(sub, (Bs,) + sub.shape[1:])
    obs = _obs_logits_batched_sub(seq3, sub, tk_obs)
    return initial_logits, transition_logits, obs


# ----------------------------------------------------------------------------
# Pure-JAX reference (mirrors the PyTorch forward) for correctness checks.
# ----------------------------------------------------------------------------
def profile_reference(precursor, insert_seq, insert, delete, substitute,
                      transfer, epsilon=1e-32):
    r0, u0, n0, rT, uT, nT = transfer
    init = (jnp.einsum('bijk,ijkl->bl', delete, u0)
            + jnp.einsum('bijk,ijkl->bl', insert, r0)
            + (-1.0 / epsilon) * n0)
    trans = (jnp.einsum('bijk,ijklf->blf', delete, uT)
             + jnp.einsum('bijk,ijklf->blf', insert, rT)
             + (-1.0 / epsilon) * nT)
    seq = jnp.concatenate([precursor, insert_seq], axis=-2)
    obs = jax.scipy.special.logsumexp(
        seq[..., :, :, None] + substitute[..., None, :, :], axis=-2)
    return init, trans, obs


if __name__ == "__main__":
    M, D, A, B = 8, 5, 4, 2          # seq length, latent alphabet, data alphabet, batch
    K = 2 * M + 1
    epsilon = 1e-32

    transfer = tuple(jnp.asarray(t) for t in make_transfer(M))

    key = jax.random.PRNGKey(0)
    k1, k2, k3, k4, k5 = jax.random.split(key, 5)
    precursor_seq_logits = jax.nn.log_softmax(
        jax.random.normal(k1, (B, M, D), jnp.float32), axis=-1)
    insert_seq_logits = jax.nn.log_softmax(
        jax.random.normal(k2, (B, M + 1, D), jnp.float32), axis=-1)
    insert_logits = jax.nn.log_softmax(
        jax.random.normal(k3, (B, M, 3, 2), jnp.float32), axis=-1)
    delete_logits = jax.nn.log_softmax(
        jax.random.normal(k4, (B, M, 3, 2), jnp.float32), axis=-1)
    substitute_logits = jax.nn.log_softmax(
        jax.random.normal(k5, (B, D, A), jnp.float32), axis=-1)

    # --- path 1: batched substitute_logits (batched obs kernel) ---------------
    init, trans, obs = profile_forward(
        precursor_seq_logits, insert_seq_logits, insert_logits, delete_logits,
        substitute_logits, transfer=transfer, epsilon=epsilon)
    jax.block_until_ready((init, trans, obs))

    init_r, trans_r, obs_r = profile_reference(
        precursor_seq_logits, insert_seq_logits, insert_logits, delete_logits,
        substitute_logits, transfer, epsilon)

    assert init.shape == (B, K) and trans.shape == (B, K, K) and obs.shape == (B, K, A)
    # init/trans use a bf16 hi+lo MXU path (~2^-18 effective lhs precision); tolerances
    # reflect that while the -1/eps entries remain exact.
    np.testing.assert_allclose(np.asarray(init), np.asarray(init_r), rtol=1e-4, atol=1e-3)
    np.testing.assert_allclose(np.asarray(trans), np.asarray(trans_r), rtol=1e-4, atol=1e-3)
    np.testing.assert_allclose(np.asarray(obs), np.asarray(obs_r), rtol=1e-5, atol=1e-4)

    # --- path 2: shared (unbatched) substitute_logits (batch-folded obs kernel) -
    sub_shared = substitute_logits[0]
    _, _, obs2 = profile_forward(
        precursor_seq_logits, insert_seq_logits, insert_logits, delete_logits,
        sub_shared, transfer=transfer, epsilon=epsilon)
    jax.block_until_ready(obs2)
    _, _, obs2_r = profile_reference(
        precursor_seq_logits, insert_seq_logits, insert_logits, delete_logits,
        sub_shared, transfer, epsilon)
    assert obs2.shape == (B, K, A)
    np.testing.assert_allclose(np.asarray(obs2), np.asarray(obs2_r), rtol=1e-5, atol=1e-4)

    print("KERNEL_OK")
</pallas_src>

<mosaic_0001>
module attributes {stable_mosaic.version = 11 : i64} {
  func.func @_fused_logits_kernel(%arg0: i32, %arg1: memref<8x128xbf16, #tpu.memory_space<vmem>>, %arg2: memref<8x128xbf16, #tpu.memory_space<vmem>>, %arg3: memref<128x256xi8, #tpu.memory_space<vmem>>, %arg4: memref<1x256xf32, #tpu.memory_space<vmem>>, %arg5: memref<8x256xf32, #tpu.memory_space<vmem>>) attributes {dimension_semantics = [#tpu.dimension_semantics<parallel>], iteration_bounds = array<i64: 2>, scalar_prefetch = 0 : i64, scratch_operands = 0 : i64, tpu.core_type = #tpu.core_type<tc>, window_params = [{pipeline_mode = #tpu.pipeline_mode<synchronous>, transform_indices = @transform_0, window_bounds = array<i64: 8, 128>}, {pipeline_mode = #tpu.pipeline_mode<synchronous>, transform_indices = @transform_1, window_bounds = array<i64: 8, 128>}, {transform_indices = @transform_2, window_bounds = array<i64: 128, 256>}, {transform_indices = @transform_3, window_bounds = array<i64: 1, 256>}, {transform_indices = @transform_4, window_bounds = array<i64: 8, 256>}]} {
    %c0 = arith.constant 0 : index
    %c0_0 = arith.constant 0 : index
    %0 = vector.load %arg3[%c0, %c0_0] : memref<128x256xi8, #tpu.memory_space<vmem>>, vector<128x256xi8>
    %1 = arith.sitofp %0 : vector<128x256xi8> to vector<128x256xbf16>
    %c0_1 = arith.constant 0 : index
    %c0_2 = arith.constant 0 : index
    %2 = vector.load %arg1[%c0_1, %c0_2] : memref<8x128xbf16, #tpu.memory_space<vmem>>, vector<8x128xbf16>
    %cst = arith.constant dense<0.000000e+00> : vector<8x256xf32>
    %3 = tpu.matmul %2, %1, %cst {dimension_numbers = #tpu.dot_dimension_numbers<[1], [0], [0], [1], [0, 0, 1, 1], [], []>} : vector<8x128xbf16>, vector<128x256xbf16>, vector<8x256xf32> -> vector<8x256xf32>
    %c0_3 = arith.constant 0 : index
    %c0_4 = arith.constant 0 : index
    %4 = vector.load %arg2[%c0_3, %c0_4] : memref<8x128xbf16, #tpu.memory_space<vmem>>, vector<8x128xbf16>
    %cst_5 = arith.constant dense<0.000000e+00> : vector<8x256xf32>
    %5 = tpu.matmul %4, %1, %cst_5 {dimension_numbers = #tpu.dot_dimension_numbers<[1], [0], [0], [1], [0, 0, 1, 1], [], []>} : vector<8x128xbf16>, vector<128x256xbf16>, vector<8x256xf32> -> vector<8x256xf32>
    %6 = arith.addf %3, %5 : vector<8x256xf32>
    %c0_6 = arith.constant 0 : index
    %c0_7 = arith.constant 0 : index
    %7 = vector.load %arg4[%c0_6, %c0_7] : memref<1x256xf32, #tpu.memory_space<vmem>>, vector<1x256xf32>
    %8 = vector.broadcast %7 : vector<1x256xf32> to vector<8x256xf32>
    %9 = arith.addf %6, %8 : vector<8x256xf32>
    %c0_8 = arith.constant 0 : index
    %c0_9 = arith.constant 0 : index
    %10 = vector.load %arg5[%c0_8, %c0_9] : memref<8x256xf32, #tpu.memory_space<vmem>>, vector<8x256xf32>
    tpu.vector_store %arg5[%c0_8, %c0_9], %9 {strides = array<i32>} : memref<8x256xf32, #tpu.memory_space<vmem>>, vector<8x256xf32>,
    return
  }
  func.func @transform_0(%arg0: i32) -> (i32, i32) {
    %c0_i32 = arith.constant 0 : i32
    %c0_i32_0 = arith.constant 0 : i32
    %c0_i32_1 = arith.constant 0 : i32
    return %c0_i32, %c0_i32_0 : i32, i32
  }
  func.func @transform_1(%arg0: i32) -> (i32, i32) {
    %c0_i32 = arith.constant 0 : i32
    %c0_i32_0 = arith.constant 0 : i32
    %c0_i32_1 = arith.constant 0 : i32
    return %c0_i32, %c0_i32_0 : i32, i32
  }
  func.func @transform_2(%arg0: i32) -> (i32, i32) {
    %c0_i32 = arith.constant 0 : i32
    %c0_i32_0 = arith.constant 0 : i32
    return %c0_i32, %arg0 : i32, i32
  }
  func.func @transform_3(%arg0: i32) -> (i32, i32) {
    %c0_i32 = arith.constant 0 : i32
    %c0_i32_0 = arith.constant 0 : i32
    return %c0_i32, %arg0 : i32, i32
  }
  func.func @transform_4(%arg0: i32) -> (i32, i32) {
    %c0_i32 = arith.constant 0 : i32
    %c0_i32_0 = arith.constant 0 : i32
    return %c0_i32, %arg0 : i32, i32
  }
}

</mosaic_0001>

<llo_original>
// kernel: tpu_custom_call.1
$region0: #{tpu_custom_call.1}
  #allocation0 [shape = 'u32[]', space=smem, size = 0x4, offset = 0x4, fixed_abs, tag = 'smem constant byte address 0x4 - core index']
  #allocation1 [shape = 'u32[144,128]{1,0:T(1,128)}', space=vmem, size = 0x12000, scoped, tag = 'internal scratch']
  %s0 = inlined_call_operand.hbm [shape: bf16[8,128], index: 0, kind: input, shape index: {}]
  %s1 = inlined_call_operand.hbm [shape: bf16[8,128], index: 1, kind: input, shape index: {}]
  %s2 = inlined_call_operand.hbm [shape: s8[128,512], index: 2, kind: input, shape index: {}]
  %s3 = inlined_call_operand.vmem [shape: f32[1,512], index: 3, kind: input, shape index: {}]
  %s4 = inlined_call_operand.hbm [shape: f32[8,512], index: 4, kind: output, shape index: {}]
  %s5 = sld [smem:[#allocation0]]
  $region61: #{tpu_custom_call.1} parent=0
    _
  %s7 = ssub.s32 1, %s5
  %s8 = scalar_select 0, %s7, %s5
  $region1: #{tpu_custom_call.1} parent=0
    #allocation2 [shape = 'u8[2048]{0}', space=vmem, size = 0x800, scoped, tag = 'input window, operand 0, single buffered']
    #allocation3 [shape = 's32[2]{0}', space=sflag, size = 0x8, scoped, tag = 'scoped memory for tpu_custom_call.1']
    #allocation4 [shape = 's32[2]{0}', space=sflag, size = 0x8, scoped, tag = 'scoped memory for tpu_custom_call.1']
    #allocation5 [shape = 'u8[2048]{0}', space=vmem, size = 0x800, scoped, tag = 'input window, operand 1, single buffered']
    #allocation6 [shape = 's32[1]{0}', space=sflag, size = 0x4, scoped, tag = 'scoped memory for tpu_custom_call.1']
    #allocation7 [shape = 'u8[65536]{0}', space=vmem, size = 0x10000, scoped, tag = 'input window, operand 2']
    #allocation8 [shape = 'u8[16384]{0}', space=vmem, size = 0x4000, scoped, tag = 'output window, operand 0']
    %9 = vsyncpa [#allocation3], 0
    %10 = vsyncpa [#allocation6], 0
    %11 = vsyncpa [#allocation4], 0
    %s12 = scalar_lea.sflag [#allocation4], 1
    %13 = vsyncpa %s12, 0
    loop: start=0, step=1, limit=4
    $region2: #{tpu_custom_call.1} parent=1 // loop_pre_header
      _
    $region3: #{tpu_custom_call.1} parent=1 // loop_header
      %s15 = sphi 0, %s19
      %p16 = scmp.ge.s32.totalorder %s15, 4
      %s23 = sphi 0, %s23
      %s25 = sphi 0, %s23
      %s26 = sphi 0, %s25
      %s40 = sphi 0, %s26
      %s44 = sphi 0, %s44
      %s46 = sphi 0, %s44
      %s47 = sphi 0, %s46
      %s61 = sphi 0, %s47
      %s67 = sphi 0, %s69
      %s70 = sphi 0, %s67
      %s71 = sphi 0, %s70
      %s87 = sphi 0, %s71
      %s93 = sphi 0, %s95
      %s96 = sphi 0, %s93
      %s97 = sphi 0, %s96
      %s113 = sphi 0, %s97
      %s119 = sphi 0, %s121
      %s122 = sphi 0, %s119
      %s123 = sphi 0, %s122
      %s139 = sphi 0, %s123
    $region4: #{tpu_custom_call.1} parent=1 // loop_header_branch
      %18 = sbr.rel (%p16) target = $region8
    $region5: #{tpu_custom_call.1} parent=1 // loop_body
      %s20 = ssub.s32 %s15, 1
      %s21 = ssub.s32 %s15, 2
      %s22 = sadd.s32 %s15, 1
      %s24 = sadd.s32 %s23, 1
      %p27 = scmp.eq.s32.totalorder %s15, 1
      %p28 = scmp.ne.s32.totalorder %s23, %s25
      %p29 = scmp.eq.s32.totalorder %s15, 0
      %p30 = por %p28, %p29
      %p31 = scmp.ne.s32.totalorder %s23, %s25
      %p32 = scmp.eq.s32.totalorder %s20, 1
      %p33 = por %p31, %p32
      %p34 = scmp.ne.s32.totalorder %s25, %s26
      %p35 = scmp.eq.s32.totalorder %s20, 0
      %p36 = por %p34, %p35
      %p37 = scmp.ne.s32.totalorder %s25, %s26
      %p38 = scmp.eq.s32.totalorder %s21, 1
      %p39 = por %p37, %p38
      %p41 = scmp.ne.s32.totalorder %s26, %s40
      %p42 = scmp.eq.s32.totalorder %s21, 0
      %p43 = por %p41, %p42
      %s45 = sadd.s32 %s44, 1
      %p48 = scmp.eq.s32.totalorder %s15, 1
      %p49 = scmp.ne.s32.totalorder %s44, %s46
      %p50 = scmp.eq.s32.totalorder %s15, 0
      %p51 = por %p49, %p50
      %p52 = scmp.ne.s32.totalorder %s44, %s46
      %p53 = scmp.eq.s32.totalorder %s20, 1
      %p54 = por %p52, %p53
      %p55 = scmp.ne.s32.totalorder %s46, %s47
      %p56 = scmp.eq.s32.totalorder %s20, 0
      %p57 = por %p55, %p56
      %p58 = scmp.ne.s32.totalorder %s46, %s47
      %p59 = scmp.eq.s32.totalorder %s21, 1
      %p60 = por %p58, %p59
      %p62 = scmp.ne.s32.totalorder %s47, %s61
      %p63 = scmp.eq.s32.totalorder %s21, 0
      %p64 = por %p62, %p63
      %s65 = ssub.s32 %s15, %s22
      %p66 = scmp.eq.s32.totalorder %s65, 0
      %s68 = sadd.s32 %s67, 1
      %s69 = scalar_select %p66, %s67, %s68
      %p72 = pneg %p66
      %p73 = scmp.eq.s32.totalorder %s15, 1
      %p74 = por %p72, %p73
      %p75 = scmp.ne.s32.totalorder %s67, %s70
      %p76 = scmp.eq.s32.totalorder %s15, 0
      %p77 = por %p75, %p76
      %p78 = scmp.ne.s32.totalorder %s67, %s70
      %p79 = scmp.eq.s32.totalorder %s20, 1
      %p80 = por %p78, %p79
      %p81 = scmp.ne.s32.totalorder %s70, %s71
      %p82 = scmp.eq.s32.totalorder %s20, 0
      %p83 = por %p81, %p82
      %p84 = scmp.ne.s32.totalorder %s70, %s71
      %p85 = scmp.eq.s32.totalorder %s21, 1
      %p86 = por %p84, %p85
      %p88 = scmp.ne.s32.totalorder %s71, %s87
      %p89 = scmp.eq.s32.totalorder %s21, 0
      %p90 = por %p88, %p89
      %s91 = ssub.s32 %s15, %s22
      %p92 = scmp.eq.s32.totalorder %s91, 0
      %s94 = sadd.s32 %s93, 1
      %s95 = scalar_select %p92, %s93, %s94
      %p98 = pneg %p92
      %p99 = scmp.eq.s32.totalorder %s15, 1
      %p100 = por %p98, %p99
      %p101 = scmp.ne.s32.totalorder %s93, %s96
      %p102 = scmp.eq.s32.totalorder %s15, 0
      %p103 = por %p101, %p102
      %p104 = scmp.ne.s32.totalorder %s93, %s96
      %p105 = scmp.eq.s32.totalorder %s20, 1
      %p106 = por %p104, %p105
      %p107 = scmp.ne.s32.totalorder %s96, %s97
      %p108 = scmp.eq.s32.totalorder %s20, 0
      %p109 = por %p107, %p108
      %p110 = scmp.ne.s32.totalorder %s96, %s97
      %p111 = scmp.eq.s32.totalorder %s21, 1
      %p112 = por %p110, %p111
      %p114 = scmp.ne.s32.totalorder %s97, %s113
      %p115 = scmp.eq.s32.totalorder %s21, 0
      %p116 = por %p114, %p115
      %s117 = ssub.s32 %s15, %s22
      %p118 = scmp.eq.s32.totalorder %s117, 0
      %s120 = sadd.s32 %s119, 1
      %s121 = scalar_select %p118, %s119, %s120
      %p124 = pneg %p118
      %p125 = scmp.eq.s32.totalorder %s15, 1
      %p126 = por %p124, %p125
      %p127 = scmp.ne.s32.totalorder %s119, %s122
      %p128 = scmp.eq.s32.totalorder %s15, 0
      %p129 = por %p127, %p128
      %p130 = scmp.ne.s32.totalorder %s119, %s122
      %p131 = scmp.eq.s32.totalorder %s20, 1
      %p132 = por %p130, %p131
      %p133 = scmp.ne.s32.totalorder %s122, %s123
      %p134 = scmp.eq.s32.totalorder %s20, 0
      %p135 = por %p133, %p134
      %p136 = scmp.ne.s32.totalorder %s122, %s123
      %p137 = scmp.eq.s32.totalorder %s21, 1
      %p138 = por %p136, %p137
      %p140 = scmp.ne.s32.totalorder %s123, %s139
      %p141 = scmp.eq.s32.totalorder %s21, 0
      %p142 = por %p140, %p141
      %p143 = scmp.le.s32.totalorder 1, %s15
      %p144 = scmp.lt.s32.totalorder %s15, 3
      %p145 = pnand %p143, %p144
      %p146 = pneg %p145
      // Predicated region
      $region9: #{tpu_custom_call.1} parent=5 // pred_check
        _
      $region10: #{tpu_custom_call.1} parent=5 // pred_check_branch
        %148 = sbr.rel (%p145) target = $region12
      $region11: #{tpu_custom_call.1} parent=5 // pred_region
        %s149 = ssub.s32 %s15, 1
        // Predicated region
        $region13: #{tpu_custom_call.1} parent=11 // pred_check
          %p150 = pneg %p36
        $region14: #{tpu_custom_call.1} parent=11 // pred_check_branch
          %152 = sbr.rel (%p150) target = $region16
        $region15: #{tpu_custom_call.1} parent=11 // pred_region
          %s154 = ssub.s32 64, 64
          %155 = vsyncadd [#allocation3], %s154
          %s157 = sshll.u32 [#allocation2], 4
          %s158 = int_to_ptr.vmem [resolvable:$true] %s157
          %160 = dma.hbm_to_vmem [thread:$0]  %s0, 64, %s158, [#allocation3]
        $region16: #{tpu_custom_call.1} parent=11 // pred_fallthru
          _
        // Predicated region
        $region17: #{tpu_custom_call.1} parent=11 // pred_check
          %p161 = pneg %p57
        $region18: #{tpu_custom_call.1} parent=11 // pred_check_branch
          %163 = sbr.rel (%p161) target = $region20
        $region19: #{tpu_custom_call.1} parent=11 // pred_region
          %s165 = ssub.s32 64, 64
          %166 = vsyncadd [#allocation6], %s165
          %s168 = sshll.u32 [#allocation5], 4
          %s169 = int_to_ptr.vmem [resolvable:$true] %s168
          %171 = dma.hbm_to_vmem [thread:$0]  %s1, 64, %s169, [#allocation6]
        $region20: #{tpu_custom_call.1} parent=11 // pred_fallthru
          _
      $region12: #{tpu_custom_call.1} parent=5 // pred_fallthru
        _
      %p172 = scmp.lt.s32.totalorder %s15, 2
      // Predicated region
      $region21: #{tpu_custom_call.1} parent=5 // pred_check
        %p173 = pneg %p172
      $region22: #{tpu_custom_call.1} parent=5 // pred_check_branch
        %175 = sbr.rel (%p173) target = $region24
      $region23: #{tpu_custom_call.1} parent=5 // pred_region
        // Predicated region
        $region25: #{tpu_custom_call.1} parent=23 // pred_check
          %p176 = pneg %p77
        $region26: #{tpu_custom_call.1} parent=23 // pred_check_branch
          %178 = sbr.rel (%p176) target = $region28
        $region27: #{tpu_custom_call.1} parent=23 // pred_region
          %s179 = sand.u32 %s15, 1
          %s180 = scalar_lea.sflag [#allocation3], %s179
          %s181 = sand.u32 %s67, 1
          %s182 = smul.addr %s181, 64
          %s183 = scalar_lea.vmem [#allocation7], %s182
          %s184 = smul.u32 2, %s15
          %s186 = ssub.s32 1024, 1024
          %187 = vsyncadd %s180, %s186
          %s188 = smul.addr %s184, 128
          %s189 = scalar_lea.hbm %s2, %s188
          %s190 = sshll.u32 %s183, 4
          %s191 = int_to_ptr.vmem [resolvable:$true] %s190
          %196 = dma.hbm_to_vmem [thread:$0]  %s189, 1024, %s191, %s180, 512, 256, 16
        $region28: #{tpu_custom_call.1} parent=23 // pred_fallthru
          _
        // Predicated region
        $region29: #{tpu_custom_call.1} parent=23 // pred_check
          %p197 = pneg %p103
        $region30: #{tpu_custom_call.1} parent=23 // pred_check_branch
          %199 = sbr.rel (%p197) target = $region32
        $region31: #{tpu_custom_call.1} parent=23 // pred_region
          %s200 = smul.u32 2, %s15
          %p201 = scmp.lt.s32.totalorder %s200, 3
          %s202 = scalar_select %p201, %s200, 3
          %s203 = scalar_lea.vmem %s3, %s202
          %s204 = smul.u32 2, %s15
        $region32: #{tpu_custom_call.1} parent=23 // pred_fallthru
          _
      $region24: #{tpu_custom_call.1} parent=5 // pred_fallthru
        _
      %p205 = scmp.le.s32.totalorder 1, %s15
      %p206 = scmp.lt.s32.totalorder %s15, 3
      %p207 = pnand %p205, %p206
      %p208 = pneg %p207
      // Predicated region
      $region33: #{tpu_custom_call.1} parent=5 // pred_check
        _
      $region34: #{tpu_custom_call.1} parent=5 // pred_check_branch
        %210 = sbr.rel (%p207) target = $region36
      $region35: #{tpu_custom_call.1} parent=5 // pred_region
        %s211 = ssub.s32 %s15, 1
        // Predicated region
        $region37: #{tpu_custom_call.1} parent=35 // pred_check
          %p212 = pneg %p36
        $region38: #{tpu_custom_call.1} parent=35 // pred_check_branch
          %214 = sbr.rel (%p212) target = $region40
        $region39: #{tpu_custom_call.1} parent=35 // pred_region
          %215 = dma.done [#allocation3], 64
        $region40: #{tpu_custom_call.1} parent=35 // pred_fallthru
          _
        // Predicated region
        $region41: #{tpu_custom_call.1} parent=35 // pred_check
          %p216 = pneg %p57
        $region42: #{tpu_custom_call.1} parent=35 // pred_check_branch
          %218 = sbr.rel (%p216) target = $region44
        $region43: #{tpu_custom_call.1} parent=35 // pred_region
          %219 = dma.done [#allocation6], 64
        $region44: #{tpu_custom_call.1} parent=35 // pred_fallthru
          _
        %s220 = sand.u32 %s20, 1
        %s221 = scalar_lea.sflag [#allocation3], %s220
        %s222 = sand.u32 %s70, 1
        %s223 = smul.addr %s222, 64
        %s224 = scalar_lea.vmem [#allocation7], %s223
        // Predicated region
        $region45: #{tpu_custom_call.1} parent=35 // pred_check
          %p225 = pneg %p83
        $region46: #{tpu_custom_call.1} parent=35 // pred_check_branch
          %227 = sbr.rel (%p225) target = $region48
        $region47: #{tpu_custom_call.1} parent=35 // pred_region
          %228 = dma.done %s221, 1024
        $region48: #{tpu_custom_call.1} parent=35 // pred_fallthru
          _
        %p229 = pneg %p36
        %p230 = pneg %p33
        %p231 = pneg %p57
        %p232 = pneg %p54
        %s233 = sand.u32 %s20, 1
        %s234 = scalar_lea.sflag [#allocation3], %s233
        %s235 = sand.u32 %s70, 1
        %s236 = smul.addr %s235, 64
        %s237 = scalar_lea.vmem [#allocation7], %s236
        %p238 = pneg %p83
        %p239 = pneg %p80
        %s240 = smul.u32 2, %s20
        %p241 = scmp.lt.s32.totalorder %s240, 3
        %s242 = scalar_select %p241, %s240, 3
        %s243 = scalar_lea.vmem %s3, %s242
        %p244 = pneg %p109
        %p245 = pneg %p106
        %p246 = pneg %p135
        %p247 = pneg %p132
        %s248 = sand.u32 %s122, 1
        %s249 = scalar_lea.sflag [#allocation4], %s248
        %s250 = sand.u32 %s122, 1
        %s251 = smul.addr %s250, 16
        %s252 = scalar_lea.vmem [#allocation8], %s251
        %s253 = smul.u32 2, %s20
        %s254 = smul.u32 2, %s20
        %p255 = scmp.lt.s32.totalorder %s254, 3
        %s256 = scalar_select %p255, %s254, 3
        %s257 = scalar_lea.vmem %s3, %s256
        %s258 = smul.u32 2, %s20
        %s259 = smul.u32 2, %s20
        %v261 = vld [vmem:[%s224] sm:$0xff]
        %v262 = vld [vmem:[%s224 + $0x8] sm:$0xff]
        %v263 = vld [vmem:[%s224 + $0x10] sm:$0xff]
        %v264 = vld [vmem:[%s224 + $0x18] sm:$0xff]
        %v265 = vld [vmem:[%s224 + $0x20] sm:$0xff]
        %v266 = vld [vmem:[%s224 + $0x28] sm:$0xff]
        %v267 = vld [vmem:[%s224 + $0x30] sm:$0xff]
        %v268 = vld [vmem:[%s224 + $0x38] sm:$0xff]
        %v269 = vunpack.c.l.s8.bf16 %v261
        %v270 = vunpack.c.l.s8.bf16 %v262
        %v271 = vunpack.c.h.s8.bf16 %v261
        %v272 = vunpack.c.h.s8.bf16 %v262
        %v273 = vunpack.c.l.s8.bf16 %v263
        %v274 = vunpack.c.l.s8.bf16 %v264
        %v275 = vunpack.c.h.s8.bf16 %v263
        %v276 = vunpack.c.h.s8.bf16 %v264
        %v277 = vunpack.c.l.s8.bf16 %v265
        %v278 = vunpack.c.l.s8.bf16 %v266
        %v279 = vunpack.c.h.s8.bf16 %v265
        %v280 = vunpack.c.h.s8.bf16 %v266
        %v281 = vunpack.c.l.s8.bf16 %v267
        %v282 = vunpack.c.l.s8.bf16 %v268
        %v283 = vunpack.c.h.s8.bf16 %v267
        %v284 = vunpack.c.h.s8.bf16 %v268
        %v285 = vld [vmem:[#allocation2] sm:$0xf]
        %v286 = vld [vmem:[#allocation5] sm:$0xf]
        %287 = vmatprep.subr.bf16.mxu0 %v270
        %288 = vmatpush1.bf16.msra.mxu0 %v269
        %289 = vmatprep.subr.bf16.mxu0 %v272
        %290 = vmatpush1.bf16.msra.mxu0 %v271
        %291 = vmatprep.subr.bf16.mxu0 %v274
        %292 = vmatpush1.bf16.msra.mxu0 %v273
        %293 = vmatprep.subr.bf16.mxu0 %v276
        %294 = vmatpush1.bf16.msra.mxu0 %v275
        %295 = vmatprep.subr.bf16.mxu0 %v278
        %296 = vmatpush1.bf16.msra.mxu0 %v277
        %297 = vmatprep.subr.bf16.mxu0 %v280
        %298 = vmatpush1.bf16.msra.mxu0 %v279
        %299 = vmatprep.subr.bf16.mxu0 %v282
        %300 = vmatpush1.bf16.msra.mxu0 %v281
        %301 = vmatprep.subr.bf16.mxu0 %v284
        %302 = vmatpush1.bf16.msra.mxu0 %v283
        %303 = vmatprep.subr.bf16.mxu0 0
        %304 = vmatpush1.bf16.msra.mxu0 0
        %305 = vmatprep.subr.bf16.mxu0 0
        %306 = vmatpush1.bf16.msra.mxu0 0
        %307 = vmatprep.subr.bf16.mxu0 0
        %308 = vmatpush1.bf16.msra.mxu0 0
        %309 = vmatprep.subr.bf16.mxu0 0
        %310 = vmatpush1.bf16.msra.mxu0 0
        %311 = vmatprep.subr.bf16.mxu0 0
        %312 = vmatpush1.bf16.msra.mxu0 0
        %313 = vmatprep.subr.bf16.mxu0 0
        %314 = vmatpush1.bf16.msra.mxu0 0
        %315 = vmatprep.subr.bf16.mxu0 0
        %316 = vmatpush1.bf16.msra.mxu0 0
        %317 = vmatprep.subr.bf16.mxu0 0
        %318 = vmatpush1.bf16.msra.mxu0 0
        %319 = vmatprep.mubr.bf16.mxu0 0
        %320 = vmatmul.mubr.bf16.gmra.mrb[0].mxu0 %v286
        %v321 = vpop.f32.mrb[0].mxu0
        %v322 = vadd.f32 0.0, %v321
        %v323 = vpop.f32.mrb[0].mxu0
        %v324 = vadd.f32 0.0, %v323
        %v325 = vpop.f32.mrb[0].mxu0
        %v326 = vpop.f32.mrb[0].mxu0
        %327 = vdwg.mxu0
        %328 = vmatprep.subr.bf16.mxu0 %v270
        %329 = vmatpush1.bf16.msra.mxu0 %v269
        %330 = vmatprep.subr.bf16.mxu0 %v272
        %331 = vmatpush1.bf16.msra.mxu0 %v271
        %332 = vmatprep.subr.bf16.mxu0 %v274
        %333 = vmatpush1.bf16.msra.mxu0 %v273
        %334 = vmatprep.subr.bf16.mxu0 %v276
        %335 = vmatpush1.bf16.msra.mxu0 %v275
        %336 = vmatprep.subr.bf16.mxu0 %v278
        %337 = vmatpush1.bf16.msra.mxu0 %v277
        %338 = vmatprep.subr.bf16.mxu0 %v280
        %339 = vmatpush1.bf16.msra.mxu0 %v279
        %340 = vmatprep.subr.bf16.mxu0 %v282
        %341 = vmatpush1.bf16.msra.mxu0 %v281
        %342 = vmatprep.subr.bf16.mxu0 %v284
        %343 = vmatpush1.bf16.msra.mxu0 %v283
        %344 = vmatprep.subr.bf16.mxu0 0
        %345 = vmatpush1.bf16.msra.mxu0 0
        %346 = vmatprep.subr.bf16.mxu0 0
        %347 = vmatpush1.bf16.msra.mxu0 0
        %348 = vmatprep.subr.bf16.mxu0 0
        %349 = vmatpush1.bf16.msra.mxu0 0
        %350 = vmatprep.subr.bf16.mxu0 0
        %351 = vmatpush1.bf16.msra.mxu0 0
        %352 = vmatprep.subr.bf16.mxu0 0
        %353 = vmatpush1.bf16.msra.mxu0 0
        %354 = vmatprep.subr.bf16.mxu0 0
        %355 = vmatpush1.bf16.msra.mxu0 0
        %356 = vmatprep.subr.bf16.mxu0 0
        %357 = vmatpush1.bf16.msra.mxu0 0
        %358 = vmatprep.subr.bf16.mxu0 0
        %359 = vmatpush1.bf16.msra.mxu0 0
        %360 = vmatprep.mubr.bf16.mxu0 0
        %361 = vmatmul.mubr.bf16.gmra.mrb[0].mxu0 %v285
        %v362 = vpop.f32.mrb[0].mxu0
        %v363 = vadd.f32 %v322, %v362
        %v364 = vpop.f32.mrb[0].mxu0
        %v365 = vadd.f32 %v324, %v364
        %v366 = vpop.f32.mrb[0].mxu0
        %v367 = vpop.f32.mrb[0].mxu0
        %368 = vdwg.mxu0
        %v369 = vld [vmem:[%s257] sm:$0x3]
        %v371 = vlaneseq
        %v372 = vshrl.u32 %v371, 7
        %v373 = vsub.s32 0, %v372
        %v374 = vrot.slane %v369, %v373
        %v375 = vlaneseq
        %v376 = vshrl.u32 %v375, 7
        %v377 = vsub.s32 1, %v376
        %v378 = vrot.slane %v369, %v377
        %v381 = vadd.f32 %v363, %v374
        %v382 = vadd.f32 %v365, %v378
        %383 = vst [vmem:[%s252] sm:$0xff] %v381
        %384 = vst [vmem:[%s252 + $0x8] sm:$0xff] %v382
        %s385 = sand.u32 %s122, 1
        %s386 = scalar_lea.sflag [#allocation4], %s385
        %s387 = sand.u32 %s122, 1
        %s388 = smul.addr %s387, 16
        %s389 = scalar_lea.vmem [#allocation8], %s388
        // Predicated region
        $region49: #{tpu_custom_call.1} parent=35 // pred_check
          %p390 = pneg %p132
        $region50: #{tpu_custom_call.1} parent=35 // pred_check_branch
          %392 = sbr.rel (%p390) target = $region52
        $region51: #{tpu_custom_call.1} parent=35 // pred_region
          %s393 = smul.u32 2, %s20
          %s395 = ssub.s32 256, 256
          %396 = vsyncadd %s386, %s395
          %s397 = smul.addr %s393, 128
          %s398 = scalar_lea.hbm %s4, %s397
          %s400 = sshll.u32 %s389, 4
          %s401 = int_to_ptr.vmem [resolvable:$true] %s400
          %403 = dma.vmem_to_hbm [thread:$0]  %s401, 256, %s398, %s386
        $region52: #{tpu_custom_call.1} parent=35 // pred_fallthru
          _
      $region36: #{tpu_custom_call.1} parent=5 // pred_fallthru
        _
      %p404 = scmp.le.s32.totalorder 2, %s15
      // Predicated region
      $region53: #{tpu_custom_call.1} parent=5 // pred_check
        %p405 = pneg %p404
      $region54: #{tpu_custom_call.1} parent=5 // pred_check_branch
        %407 = sbr.rel (%p405) target = $region56
      $region55: #{tpu_custom_call.1} parent=5 // pred_region
        %s408 = ssub.s32 %s15, 2
        // Predicated region
        $region57: #{tpu_custom_call.1} parent=55 // pred_check
          %p409 = pneg %p138
        $region58: #{tpu_custom_call.1} parent=55 // pred_check_branch
          %411 = sbr.rel (%p409) target = $region60
        $region59: #{tpu_custom_call.1} parent=55 // pred_region
          %s412 = sand.u32 %s123, 1
          %s413 = scalar_lea.sflag [#allocation4], %s412
          %s414 = sand.u32 %s123, 1
          %s415 = smul.addr %s414, 16
          %s416 = scalar_lea.vmem [#allocation8], %s415
          %417 = dma.done %s413, 256
        $region60: #{tpu_custom_call.1} parent=55 // pred_fallthru
          _
      $region56: #{tpu_custom_call.1} parent=5 // pred_fallthru
        _
    $region6: #{tpu_custom_call.1} parent=1 // loop_footer
      %s19 = sadd.s32 1, %s15
    $region7: #{tpu_custom_call.1} parent=1 // loop_footer_branch
      %14 = sbr.rel target = $region3
    $region8: #{tpu_custom_call.1} parent=1 // loop_exit
      _
    %418 = vsyncpa [#allocation3], 1
    %s419 = scalar_lea.sflag [#allocation3], 1
    %420 = vsyncpa %s419, 1
    %421 = vsyncpa [#allocation6], 1
    %422 = vsyncpa [#allocation4], 1
    %s423 = scalar_lea.sflag [#allocation4], 1
    %424 = vsyncpa %s423, 1

</llo_original>
